<compile_context>
chip_gen: v7x
topology: tpu7x:2x2x1
jax: 0.10.0
libtpu: 0.0.40
codegen_flags: <defaults>
</compile_context>

<pallas_src>
import math
import numpy as np
import jax
import jax.numpy as jnp
from jax.experimental import pallas as pl
from jax.experimental.pallas import tpu as pltpu


# ----------------------------------------------------------------------------
# Host-side (plain numpy) precompute of the module buffers `sha` / `shb` and
# the fused weight W.  Deterministic, in-script; mirrors FromS2Grid.__init__.
# ----------------------------------------------------------------------------
def complete_lmax_res(lmax, res_beta, res_alpha):
    if res_beta is None:
        res_beta = 2 * (lmax + 1)
    if res_alpha is None:
        if lmax is not None:
            res_alpha = max(2 * lmax + 1, res_beta - 1) if res_beta is not None else 2 * lmax + 1
        elif res_beta is not None:
            res_alpha = res_beta - 1
    if lmax is None:
        lmax = min(res_beta // 2 - 1, res_alpha // 2)
    assert res_beta % 2 == 0
    assert lmax + 1 <= res_beta // 2
    return lmax, res_beta, res_alpha


def s2_grid(res_beta, res_alpha):
    betas = (np.arange(res_beta) + 0.5) / res_beta * math.pi
    alphas = np.arange(res_alpha) / res_alpha * 2 * math.pi
    return betas, alphas


def sh_alpha(lmax, alphas):
    # [res_alpha, 2*lmax+1]; columns ordered m = -lmax..lmax so that x @ sha == rfft(x, lmax)
    cols = [math.sqrt(2.0) * np.sin(m * alphas) for m in range(lmax, 0, -1)]
    cols.append(np.ones_like(alphas))
    cols += [math.sqrt(2.0) * np.cos(m * alphas) for m in range(1, lmax + 1)]
    return np.stack(cols, axis=1)


def sh_z(lmax, z, y):
    # fully normalized associated Legendre (z-part of real SH), no Condon-Shortley.
    # returns [res_beta, (lmax+1)**2]; entry at index l*l + l + m  ->  N_l^{|m|} P_l^{|m|}(z)
    nb = z.shape[0]
    Q = np.zeros((lmax + 1, lmax + 1, nb))
    Q[0, 0] = 1.0 / math.sqrt(4 * math.pi)
    for m in range(1, lmax + 1):
        Q[m, m] = math.sqrt((2 * m + 1) / (2 * m)) * y * Q[m - 1, m - 1]
    for m in range(0, lmax):
        Q[m + 1, m] = math.sqrt(2 * m + 3) * z * Q[m, m]
    for m in range(0, lmax + 1):
        for l in range(m + 2, lmax + 1):
            a = math.sqrt((4 * l * l - 1) / (l * l - m * m))
            b = math.sqrt(((l - 1) ** 2 - m * m) / (4 * (l - 1) ** 2 - 1))
            Q[l, m] = a * (z * Q[l - 1, m] - b * Q[l - 2, m])
    out = np.zeros((nb, (lmax + 1) ** 2))
    for l in range(lmax + 1):
        for mm in range(-l, l + 1):
            out[:, l * l + l + mm] = Q[l, abs(mm)]
    return out


def expand_matrix(lmax):
    M = np.zeros((lmax + 1, 2 * lmax + 1, (lmax + 1) ** 2))
    for l in range(lmax + 1):
        M[l, lmax - l:lmax + l + 1, l * l:(l + 1) ** 2] = np.eye(2 * l + 1)
    return M


def quadrature_weights(b):
    # Driscoll-Healy quadrature weights on 2b latitudes.
    # TODO(synk): constant normalization follows lie_learn's S3 convention only approximately.
    k = np.arange(b)
    w = np.array([(2.0 / b) * np.sin(np.pi * (2 * j + 1) / (4 * b)) *
                  np.sum(np.sin((2 * j + 1) * (2 * k + 1) * np.pi / (4 * b)) / (2 * k + 1))
                  for j in range(2 * b)])
    return w / (2.0 * (2 * b) ** 2)


def make_from_s2_grid_buffers(res, lmax, normalization="component", lmax_in=None):
    lmax, res_beta, res_alpha = complete_lmax_res(lmax, *res)
    if lmax_in is None:
        lmax_in = lmax
    betas, alphas = s2_grid(res_beta, res_alpha)
    sha = sh_alpha(lmax, alphas)                                    # [A, 2*lmax+1]
    shz = sh_z(lmax, np.cos(betas), np.abs(np.sin(betas)))          # [B, (lmax+1)**2]
    if normalization == "component":
        n = math.sqrt(4 * math.pi) * np.sqrt(2 * np.arange(lmax + 1) + 1) * math.sqrt(lmax_in + 1)
    elif normalization == "norm":
        n = math.sqrt(4 * math.pi) * np.ones(lmax + 1) * math.sqrt(lmax_in + 1)
    else:
        n = 4 * math.pi * np.ones(lmax + 1)
    m = expand_matrix(lmax)                                         # [lmax+1, 2*lmax+1, (lmax+1)**2]
    qw = quadrature_weights(res_beta // 2) * res_beta ** 2 / res_alpha
    shb = np.einsum("lmj,bj,lmi,l,b->mbi", m, shz, m, n, qw)        # [2*lmax+1, B, (lmax+1)**2]

    # Fused weight: out[z, i] = sum_{b,a} x[z, b, a] * W[b*A + a, i]
    W = np.einsum("am,mbi->bai", sha, shb).reshape(res_beta * res_alpha, (lmax + 1) ** 2)
    # NOTE: prefer grid resolutions with B*A % 128 == 0 (as here: 8*16=128).  For
    # non-aligned K the (tz, K) block is still legal (full-dim K), just lane-sparse;
    # we deliberately do NOT pad/copy x at runtime — that would add a second HBM
    # pass to a mem-bound kernel.

    return (jnp.asarray(sha, jnp.float32), jnp.asarray(shb, jnp.float32),
            jnp.asarray(W, jnp.float32), lmax, res_beta, res_alpha)


# ----------------------------------------------------------------------------
# Pallas kernel: one z-tiled MXU matmul against the resident fused weight.
# ----------------------------------------------------------------------------
def _from_s2_grid_kernel(x_ref, w_ref, o_ref):
    # x_ref: (tz, B*A)   w_ref: (B*A, I)   o_ref: (tz, I)
    o_ref[...] = jnp.dot(x_ref[...], w_ref[...],
                         preferred_element_type=jnp.float32).astype(o_ref.dtype)


def _round_up(v, m):
    return -(-v // m) * m


def _tpu_chip_props():
    """Best-effort (tensorcores_per_chip, scoped-VMEM cap in bytes)."""
    kind = ""
    try:
        kind = jax.devices()[0].device_kind.lower()
    except Exception:
        pass
    if ("v7" in kind) or ("7x" in kind) or ("tpu7" in kind):
        # v7x: 2 TensorCores/chip, 64 MiB physical VMEM per TC -> leave headroom.
        return 2, 56 << 20
    # v5e / v6e: 1 TensorCore, 128 MiB physical VMEM (default scoped limit is
    # only 16/32 MiB, so the explicit limit below is what enables big tiles).
    # TODO(synk): pltpu.get_tpu_info() could supply exact VMEM capacity; device_kind
    # parsing is used as the lower-risk path across jax versions.
    return 1, 100 << 20


def from_s2_grid(x, w, *, tz=None, force_pallas=False):
    """x: [..., beta, alpha] -> [..., (lmax+1)**2] via one fused matmul."""
    size = x.shape[:-2]
    res_beta, res_alpha = x.shape[-2:]
    K, I = w.shape
    assert K == res_beta * res_alpha, (K, res_beta, res_alpha)
    Z = int(np.prod(size)) if len(size) else 1

    # Free, contiguous reshape — no transpose, no pad (one HBM pass over x).
    xf = x.reshape(Z, K)
    in_bytes = jnp.dtype(x.dtype).itemsize
    if x.dtype == jnp.bfloat16:
        # Native MXU bf16 rate and half the dominant x HBM stream; accumulation
        # stays f32 in-kernel.
        # TODO(synk): validate bf16 end-to-end against the module's tolerance.
        w = w.astype(jnp.bfloat16)

    # Tiny inputs: pallas_call overhead dominates — plain XLA dot is as fast.
    if (not force_pallas) and Z * K * in_bytes < (1 << 20):
        out = jnp.dot(xf, w, preferred_element_type=jnp.float32).astype(x.dtype)
        return out.reshape(*size, I)

    n_tc, vmem_cap = _tpu_chip_props()

    # z tile: as large as possible (mem-bound kernel -> fewest, biggest DMAs).
    if tz is None:
        tz = 8192 if x.dtype == jnp.bfloat16 else 4096
    if Z <= 8:
        tz_eff = Z
    else:
        tz_eff = min(tz, _round_up(Z, 8))
        # Generation-aware split: on v7x aim for >= 2 grid steps per TensorCore
        # (grid >= 4) so each core still double-buffers its x tile after megacore
        # sharding.  On single-TC chips (v5e/v6e) don't force a split.
        force_steps = 2 * n_tc if n_tc > 1 else 1
        if force_steps > 1 and Z >= force_steps * 256:
            per_step = _round_up(-(-Z // force_steps), 8)
            tz_eff = min(tz_eff, per_step)
    num_steps = pl.cdiv(Z, tz_eff)          # boundary tile handled by Pallas masking
    grid = (num_steps,)

    # Explicit VMEM budget: 3x input buffers (Buffered(3)), 2x lane-padded output
    # buffers, resident (possibly double-buffered) weight, plus 50% headroom.
    # Capped generation-aware (56 MiB on v7x, ~100 MiB on v5e/v6e).
    K_vmem = _round_up(K, 128)
    I_vmem = _round_up(I, 128)
    w_bytes = jnp.dtype(w.dtype).itemsize
    vmem_needed = (3 * tz_eff * K_vmem * in_bytes
                   + 2 * tz_eff * I_vmem * in_bytes
                   + 2 * _round_up(K, 8) * I_vmem * w_bytes)
    vmem_limit = int(min(max(int(1.5 * vmem_needed), 8 << 20), vmem_cap))

    # Input pipeline depth 3 when the grid is long enough to benefit (hides the
    # ~600-cycle per-step DMA issue latency on this DMA-rate-limited loop).
    def _x_index_map(z):
        return (z, 0)
    if num_steps >= 3:
        try:
            x_spec = pl.BlockSpec((tz_eff, K), _x_index_map, pipeline_mode=pl.Buffered(3))
        except TypeError:  # older jax without pipeline_mode kwarg
            x_spec = pl.BlockSpec((tz_eff, K), _x_index_map)
    else:
        x_spec = pl.BlockSpec((tz_eff, K), _x_index_map)

    # TODO(synk): output last dim I=(lmax+1)**2 is < 128 lanes -> masked stores; a
    # lane-dense reshaped out_spec only matters for store-bound (very large lmax) variants.
    out = pl.pallas_call(
        _from_s2_grid_kernel,
        out_shape=jax.ShapeDtypeStruct((Z, I), x.dtype),
        grid_spec=pltpu.PrefetchScalarGridSpec(
            num_scalar_prefetch=0,
            grid=grid,
            in_specs=[
                x_spec,                                       # dense, lane-aligned when K%128==0
                pl.BlockSpec((K, I), lambda z: (0, 0)),       # fused weight, resident in VMEM
            ],
            out_specs=pl.BlockSpec((tz_eff, I), lambda z: (z, 0)),
        ),
        compiler_params=pltpu.CompilerParams(
            dimension_semantics=("parallel",),
            vmem_limit_bytes=vmem_limit,
        ),
    )(xf, w)
    return out.reshape(*size, I)


if __name__ == "__main__":
    # Module config: res=(res_beta=8, res_alpha=16), lmax=3 -> output dim (lmax+1)**2 = 16
    sha, shb, W, lmax, res_beta, res_alpha = make_from_s2_grid_buffers(res=(8, 16), lmax=3)
    I = (lmax + 1) ** 2

    sha64 = np.asarray(sha, np.float64)
    shb64 = np.asarray(shb, np.float64)

    def reference(x_np):
        # Exact (float64 numpy) forward semantics: two unfused einsums.
        xf = x_np.reshape(-1, res_beta, res_alpha).astype(np.float64)
        xm = np.einsum("am,zba->zbm", sha64, xf)
        out = np.einsum("mbi,zbm->zi", shb64, xm)
        return out.reshape(*x_np.shape[:-2], I)

    key = jax.random.PRNGKey(0)
    k1, k2 = jax.random.split(key)

    # --- Test 1: small module-consistent shape (Z=8 -> one full z tile) ---------
    x = jax.random.normal(k1, (2, 4, res_beta, res_alpha), dtype=jnp.float32)
    out = jax.block_until_ready(from_s2_grid(x, W, force_pallas=True))
    assert out.shape == (2, 4, I), out.shape
    assert np.allclose(np.asarray(out, np.float64), reference(np.asarray(x)),
                       rtol=1e-3, atol=1e-3)

    # --- Test 2: boundary-tile path (Z=201, tz=64 -> grid=4, last tile partial) --
    x2 = jax.random.normal(k2, (3, 67, res_beta, res_alpha), dtype=jnp.float32)
    out2 = jax.block_until_ready(from_s2_grid(x2, W, tz=64, force_pallas=True))
    assert out2.shape == (3, 67, I), out2.shape
    assert np.allclose(np.asarray(out2, np.float64), reference(np.asarray(x2)),
                       rtol=1e-3, atol=1e-3)

    print("KERNEL_OK")
</pallas_src>

<mosaic_0001>
module attributes {stable_mosaic.version = 11 : i64} {
  func.func @_from_s2_grid_kernel(%arg0: i32, %arg1: memref<8x128xf32, #tpu.memory_space<vmem>>, %arg2: memref<128x16xf32, #tpu.memory_space<vmem>>, %arg3: memref<8x16xf32, #tpu.memory_space<vmem>>) attributes {dimension_semantics = [#tpu.dimension_semantics<parallel>], iteration_bounds = array<i64: 1>, scalar_prefetch = 0 : i64, scratch_operands = 0 : i64, tpu.core_type = #tpu.core_type<tc>, window_params = [{transform_indices = @transform_0, window_bounds = array<i64: 8, 128>}, {pipeline_mode = #tpu.pipeline_mode<synchronous>, transform_indices = @transform_1, window_bounds = array<i64: 128, 16>}, {transform_indices = @transform_2, window_bounds = array<i64: 8, 16>}]} {
    %c0 = arith.constant 0 : index
    %c0_0 = arith.constant 0 : index
    %0 = vector.load %arg1[%c0, %c0_0] : memref<8x128xf32, #tpu.memory_space<vmem>>, vector<8x128xf32>
    %c0_1 = arith.constant 0 : index
    %c0_2 = arith.constant 0 : index
    %1 = vector.load %arg2[%c0_1, %c0_2] : memref<128x16xf32, #tpu.memory_space<vmem>>, vector<128x16xf32>
    %cst = arith.constant dense<0.000000e+00> : vector<8x16xf32>
    %2 = tpu.matmul %0, %1, %cst {dimension_numbers = #tpu.dot_dimension_numbers<[1], [0], [0], [1], [0, 0, 1, 1], [], []>} : vector<8x128xf32>, vector<128x16xf32>, vector<8x16xf32> -> vector<8x16xf32>
    %c0_3 = arith.constant 0 : index
    %c0_4 = arith.constant 0 : index
    %3 = vector.load %arg3[%c0_3, %c0_4] : memref<8x16xf32, #tpu.memory_space<vmem>>, vector<8x16xf32>
    tpu.vector_store %arg3[%c0_3, %c0_4], %2 {strides = array<i32>} : memref<8x16xf32, #tpu.memory_space<vmem>>, vector<8x16xf32>,
    return
  }
  func.func @transform_0(%arg0: i32) -> (i32, i32) {
    %c0_i32 = arith.constant 0 : i32
    %c0_i32_0 = arith.constant 0 : i32
    return %arg0, %c0_i32 : i32, i32
  }
  func.func @transform_1(%arg0: i32) -> (i32, i32) {
    %c0_i32 = arith.constant 0 : i32
    %c0_i32_0 = arith.constant 0 : i32
    %c0_i32_1 = arith.constant 0 : i32
    return %c0_i32, %c0_i32_0 : i32, i32
  }
  func.func @transform_2(%arg0: i32) -> (i32, i32) {
    %c0_i32 = arith.constant 0 : i32
    %c0_i32_0 = arith.constant 0 : i32
    return %arg0, %c0_i32 : i32, i32
  }
}

</mosaic_0001>

<llo_original>
// kernel: tpu_custom_call.1
$region0: #{tpu_custom_call.1}
  #allocation0 [shape = 'u32[]', space=smem, size = 0x4, offset = 0x4, fixed_abs, tag = 'smem constant byte address 0x4 - core index']
  #allocation1 [shape = 'u32[144,128]{1,0:T(1,128)}', space=vmem, size = 0x12000, scoped, tag = 'internal scratch']
  %s0 = inlined_call_operand.vmem [shape: f32[8,128], index: 0, kind: input, shape index: {}]
  %s1 = inlined_call_operand.vmem [shape: f32[128,16], index: 1, kind: input, shape index: {}]
  %s2 = inlined_call_operand.hbm [shape: f32[8,16], index: 2, kind: output, shape index: {}]
  %s3 = sld [smem:[#allocation0]]
  $region18: #{tpu_custom_call.1} parent=0
    _
  %s5 = ssub.s32 1, %s3
  %s6 = scalar_select 0, %s5, %s3
  $region1: #{tpu_custom_call.1} parent=0
    #allocation2 [shape = 'u8[4096]{0}', space=vmem, size = 0x1000, scoped, tag = 'output window, operand 0, single buffered']
    #allocation3 [shape = 's32[1]{0}', space=sflag, size = 0x4, scoped, tag = 'scoped memory for tpu_custom_call.1']
    %7 = vsyncpa [#allocation3], 0
    // Predicated region
    $region2: #{tpu_custom_call.1} parent=1 // pred_check
      _
    $region3: #{tpu_custom_call.1} parent=1 // pred_check_branch
      %9 = sbr.rel (0) target = $region5
    $region4: #{tpu_custom_call.1} parent=1 // pred_region
      _
    $region5: #{tpu_custom_call.1} parent=1 // pred_fallthru
      _
    // Predicated region
    $region6: #{tpu_custom_call.1} parent=1 // pred_check
      _
    $region7: #{tpu_custom_call.1} parent=1 // pred_check_branch
      %11 = sbr.rel (0) target = $region9
    $region8: #{tpu_custom_call.1} parent=1 // pred_region
      _
    $region9: #{tpu_custom_call.1} parent=1 // pred_fallthru
      _
    %v12 = vld [vmem:[%s0] sm:$0xff]
    %v13 = vld [vmem:[%s1] sm:$0xff]
    %v14 = vld [vmem:[%s1 + $0x8] sm:$0xff]
    %v15 = vld [vmem:[%s1 + $0x10] sm:$0xff]
    %v16 = vld [vmem:[%s1 + $0x18] sm:$0xff]
    %v17 = vld [vmem:[%s1 + $0x20] sm:$0xff]
    %v18 = vld [vmem:[%s1 + $0x28] sm:$0xff]
    %v19 = vld [vmem:[%s1 + $0x30] sm:$0xff]
    %v20 = vld [vmem:[%s1 + $0x38] sm:$0xff]
    %v21 = vld [vmem:[%s1 + $0x40] sm:$0xff]
    %v22 = vld [vmem:[%s1 + $0x48] sm:$0xff]
    %v23 = vld [vmem:[%s1 + $0x50] sm:$0xff]
    %v24 = vld [vmem:[%s1 + $0x58] sm:$0xff]
    %v25 = vld [vmem:[%s1 + $0x60] sm:$0xff]
    %v26 = vld [vmem:[%s1 + $0x68] sm:$0xff]
    %v27 = vld [vmem:[%s1 + $0x70] sm:$0xff]
    %v28 = vld [vmem:[%s1 + $0x78] sm:$0xff]
    %29 = vmatprep.subr.mxu0 0.0
    %30 = vmatpush1.msra.mxu0 %v13
    %31 = vmatprep.subr.mxu0 0.0
    %32 = vmatpush1.msra.mxu0 %v14
    %33 = vmatprep.subr.mxu0 0.0
    %34 = vmatpush1.msra.mxu0 %v15
    %35 = vmatprep.subr.mxu0 0.0
    %36 = vmatpush1.msra.mxu0 %v16
    %37 = vmatprep.subr.mxu0 0.0
    %38 = vmatpush1.msra.mxu0 %v17
    %39 = vmatprep.subr.mxu0 0.0
    %40 = vmatpush1.msra.mxu0 %v18
    %41 = vmatprep.subr.mxu0 0.0
    %42 = vmatpush1.msra.mxu0 %v19
    %43 = vmatprep.subr.mxu0 0.0
    %44 = vmatpush1.msra.mxu0 %v20
    %45 = vmatprep.subr.mxu0 0.0
    %46 = vmatpush1.msra.mxu0 %v21
    %47 = vmatprep.subr.mxu0 0.0
    %48 = vmatpush1.msra.mxu0 %v22
    %49 = vmatprep.subr.mxu0 0.0
    %50 = vmatpush1.msra.mxu0 %v23
    %51 = vmatprep.subr.mxu0 0.0
    %52 = vmatpush1.msra.mxu0 %v24
    %53 = vmatprep.subr.mxu0 0.0
    %54 = vmatpush1.msra.mxu0 %v25
    %55 = vmatprep.subr.mxu0 0.0
    %56 = vmatpush1.msra.mxu0 %v26
    %57 = vmatprep.subr.mxu0 0.0
    %58 = vmatpush1.msra.mxu0 %v27
    %59 = vmatprep.subr.mxu0 0.0
    %60 = vmatpush1.msra.mxu0 %v28
    %61 = vmatprep.subr.mxu0 0.0
    %62 = vmatpush1.msra.mxu0 0.0
    %63 = vmatprep.subr.mxu0 0.0
    %64 = vmatpush1.msra.mxu0 0.0
    %65 = vmatprep.subr.mxu0 0.0
    %66 = vmatpush1.msra.mxu0 0.0
    %67 = vmatprep.subr.mxu0 0.0
    %68 = vmatpush1.msra.mxu0 0.0
    %69 = vmatprep.subr.mxu0 0.0
    %70 = vmatpush1.msra.mxu0 0.0
    %71 = vmatprep.subr.mxu0 0.0
    %72 = vmatpush1.msra.mxu0 0.0
    %73 = vmatprep.subr.mxu0 0.0
    %74 = vmatpush1.msra.mxu0 0.0
    %75 = vmatprep.subr.mxu0 0.0
    %76 = vmatpush1.msra.mxu0 0.0
    %77 = vmatprep.subr.mxu0 0.0
    %78 = vmatpush1.msra.mxu0 0.0
    %79 = vmatprep.subr.mxu0 0.0
    %80 = vmatpush1.msra.mxu0 0.0
    %81 = vmatprep.subr.mxu0 0.0
    %82 = vmatpush1.msra.mxu0 0.0
    %83 = vmatprep.subr.mxu0 0.0
    %84 = vmatpush1.msra.mxu0 0.0
    %85 = vmatprep.subr.mxu0 0.0
    %86 = vmatpush1.msra.mxu0 0.0
    %87 = vmatprep.subr.mxu0 0.0
    %88 = vmatpush1.msra.mxu0 0.0
    %89 = vmatprep.subr.mxu0 0.0
    %90 = vmatpush1.msra.mxu0 0.0
    %91 = vmatprep.subr.mxu0 0.0
    %92 = vmatpush1.msra.mxu0 0.0
    %93 = vmatprep.mubr.f32.mxu0 0.0
    %94 = vmatmul.mubr.f32.gmra.mrb[0].mxu0 %v12
    %v95 = vpop.f32.mrb[0].mxu0
    %v96 = vadd.f32 0.0, %v95
    %v97 = vpop.f32.mrb[0].mxu0
    %98 = vdwg.mxu0
    %vm99 = vcmask 130048
    %100 = vst.msk [vmem:[#allocation2] sm:$0xff] %vm99, %v96
    // Predicated region
    $region10: #{tpu_custom_call.1} parent=1 // pred_check
      _
    $region11: #{tpu_custom_call.1} parent=1 // pred_check_branch
      %102 = sbr.rel (0) target = $region13
    $region12: #{tpu_custom_call.1} parent=1 // pred_region
      %s104 = ssub.s32 128, 128
      %105 = vsyncadd [#allocation3], %s104
      %s107 = sshll.u32 [#allocation2], 4
      %s108 = int_to_ptr.vmem [resolvable:$true] %s107
      %110 = dma.vmem_to_hbm [thread:$0]  %s108, 128, %s2, [#allocation3]
    $region13: #{tpu_custom_call.1} parent=1 // pred_fallthru
      _
    // Predicated region
    $region14: #{tpu_custom_call.1} parent=1 // pred_check
      _
    $region15: #{tpu_custom_call.1} parent=1 // pred_check_branch
      %112 = sbr.rel (0) target = $region17
    $region16: #{tpu_custom_call.1} parent=1 // pred_region
      %113 = dma.done [#allocation3], 128
    $region17: #{tpu_custom_call.1} parent=1 // pred_fallthru
      _
    %114 = vsyncpa [#allocation3], 1

</llo_original>
